<compile_context>
chip_gen: v5e
topology: v5e:2x2
jax: 0.10.0
libtpu: 0.0.40
codegen_flags: <defaults>
</compile_context>

<pallas_src>
import jax
import jax.numpy as jnp
from jax.experimental import pallas as pl
from jax.experimental.pallas import tpu as pltpu


def _nin_kernel(x_ref, w_ref, b_ref, o_ref):
    # x_ref: (1, C, tHW)  w_ref: (OC, C)  b_ref: (OC, 1)  o_ref: (1, OC, tHW)
    x = x_ref[0]                                                    # (C, tHW)
    y = jnp.dot(w_ref[...], x, preferred_element_type=jnp.float32)  # (OC, tHW), MXU
    o_ref[0] = (y + b_ref[...]).astype(o_ref.dtype)                 # bias bcast over HW lanes


def _choose_tile_hw(HW, C, OC, vmem_budget_bytes=8 << 20, cap=2048):
    """Largest multiple-of-128 spatial tile whose double-buffered in+out blocks
    fit a conservative VMEM budget (safe on v5e/v6e/v7x without raising limits)."""
    if HW <= 128:
        return HW
    fits = vmem_budget_bytes // (2 * 4 * (C + OC))   # f32, double-buffered in + out
    t = min(cap, fits, HW)
    return max(128, (t // 128) * 128)


def nin_forward(x, v, g, bias, *, tile_hw=None):
    """x: (B, C, H, W) f32.  v: (OC, C), g: (OC,), bias: (OC,)."""
    B, C, H, W = x.shape
    OC = v.shape[0]
    HW = H * W

    # weight_norm (dim=0 for Linear): W[o, :] = g[o] * v[o, :] / ||v[o, :]||
    # (no epsilon, matching PyTorch; degenerate zero rows give NaN in both)
    row_norm = jnp.sqrt(jnp.sum(v * v, axis=1, keepdims=True))
    weight = g[:, None] * v / row_norm               # (OC, C)

    # Free NCHW view -> (B, C, HW); no transpose pass on the input.
    x_flat = x.reshape(B, C, HW)

    tHW = tile_hw if tile_hw is not None else _choose_tile_hw(HW, C, OC)
    n_tiles = pl.cdiv(HW, tHW)

    cost = pl.CostEstimate(
        flops=2 * B * HW * C * OC,
        transcendentals=0,
        bytes_accessed=4 * (B * HW * (C + OC) + OC * C + OC),
    )

    y = pl.pallas_call(
        _nin_kernel,
        out_shape=jax.ShapeDtypeStruct((B, OC, HW), x.dtype),
        grid=(B, n_tiles),
        in_specs=[
            pl.BlockSpec((1, C, tHW), lambda b, t: (b, 0, t)),   # x tile (lane axis = HW)
            pl.BlockSpec((OC, C), lambda b, t: (0, 0)),          # weight (resident)
            pl.BlockSpec((OC, 1), lambda b, t: (0, 0)),          # bias   (resident)
        ],
        out_specs=pl.BlockSpec((1, OC, tHW), lambda b, t: (b, 0, t)),
        compiler_params=pltpu.CompilerParams(
            dimension_semantics=("parallel", "parallel"),
        ),
        cost_estimate=cost,
    )(x_flat, weight, bias[:, None])                 # -> (B, OC, HW)

    # PyTorch's Linear output is contiguous (B, HW, OC); the final `.view` is a
    # raw row-major reinterpret of that buffer as (B, OC, H, W).
    return jnp.transpose(y, (0, 2, 1)).reshape(B, OC, H, W)


def _reference(x, v, g, bias):
    B, C, H, W = x.shape
    OC = v.shape[0]
    weight = g[:, None] * v / jnp.sqrt(jnp.sum(v * v, axis=1, keepdims=True))
    x_seq = jnp.transpose(x.reshape(B, C, H * W), (0, 2, 1))
    y = x_seq @ weight.T + bias
    return y.reshape(B, OC, H, W)


if __name__ == "__main__":
    key = jax.random.PRNGKey(0)
    k_x, k_v, k_g, k_b = jax.random.split(key, 4)

    B, C_in, H, W = 2, 4, 16, 16
    C_out = 8

    x = jax.random.normal(k_x, (B, C_in, H, W), dtype=jnp.float32)
    v = jax.random.normal(k_v, (C_out, C_in), dtype=jnp.float32) * 0.1
    g = jax.random.normal(k_g, (C_out,), dtype=jnp.float32) * 0.1 + 1.0
    bias = jax.random.normal(k_b, (C_out,), dtype=jnp.float32) * 0.1

    # tile_hw=128 -> grid (B=2, HW tiles=2): exercises the multi-tile pipeline path.
    out = nin_forward(x, v, g, bias, tile_hw=128)
    out = jax.block_until_ready(out)

    ref = _reference(x, v, g, bias)
    assert out.shape == (B, C_out, H, W)
    assert jnp.allclose(out, ref, atol=1e-5, rtol=1e-5)

    print("KERNEL_OK")
</pallas_src>

<mosaic_0001>
module attributes {stable_mosaic.version = 11 : i64} {
  func.func @_nin_kernel(%arg0: i32, %arg1: i32, %arg2: memref<1x4x128xf32, #tpu.memory_space<vmem>>, %arg3: memref<8x4xf32, #tpu.memory_space<vmem>>, %arg4: memref<8x1xf32, #tpu.memory_space<vmem>>, %arg5: memref<1x8x128xf32, #tpu.memory_space<vmem>>) attributes {dimension_semantics = [#tpu.dimension_semantics<parallel>, #tpu.dimension_semantics<parallel>], iteration_bounds = array<i64: 2, 2>, scalar_prefetch = 0 : i64, scratch_operands = 0 : i64, tpu.core_type = #tpu.core_type<tc>, window_params = [{transform_indices = @transform_0, window_bounds = array<i64: 1, 4, 128>}, {pipeline_mode = #tpu.pipeline_mode<synchronous>, transform_indices = @transform_1, window_bounds = array<i64: 8, 4>}, {pipeline_mode = #tpu.pipeline_mode<synchronous>, transform_indices = @transform_2, window_bounds = array<i64: 8, 1>}, {transform_indices = @transform_3, window_bounds = array<i64: 1, 8, 128>}]} {
    %c0 = arith.constant 0 : index
    %c0_0 = arith.constant 0 : index
    %c0_1 = arith.constant 0 : index
    %0 = vector.load %arg2[%c0, %c0_0, %c0_1] : memref<1x4x128xf32, #tpu.memory_space<vmem>>, vector<1x4x128xf32>
    %1 = vector.shape_cast %0 : vector<1x4x128xf32> to vector<4x128xf32>
    %c0_2 = arith.constant 0 : index
    %c0_3 = arith.constant 0 : index
    %2 = vector.load %arg3[%c0_2, %c0_3] : memref<8x4xf32, #tpu.memory_space<vmem>>, vector<8x4xf32>
    %cst = arith.constant dense<0.000000e+00> : vector<8x128xf32>
    %3 = tpu.matmul %2, %1, %cst {dimension_numbers = #tpu.dot_dimension_numbers<[1], [0], [0], [1], [0, 0, 1, 1], [], []>} : vector<8x4xf32>, vector<4x128xf32>, vector<8x128xf32> -> vector<8x128xf32>
    %c0_4 = arith.constant 0 : index
    %c0_5 = arith.constant 0 : index
    %4 = vector.load %arg4[%c0_4, %c0_5] : memref<8x1xf32, #tpu.memory_space<vmem>>, vector<8x1xf32>
    %5 = vector.broadcast %4 : vector<8x1xf32> to vector<8x128xf32>
    %6 = arith.addf %3, %5 : vector<8x128xf32>
    %c0_6 = arith.constant 0 : index
    %c0_7 = arith.constant 0 : index
    %c0_8 = arith.constant 0 : index
    %7 = vector.load %arg5[%c0_6, %c0_7, %c0_8] : memref<1x8x128xf32, #tpu.memory_space<vmem>>, vector<1x8x128xf32>
    %8 = vector.shape_cast %7 : vector<1x8x128xf32> to vector<8x128xf32>
    %9 = vector.shape_cast %6 : vector<8x128xf32> to vector<1x8x128xf32>
    tpu.vector_store %arg5[%c0_6, %c0_7, %c0_8], %9 {strides = array<i32>} : memref<1x8x128xf32, #tpu.memory_space<vmem>>, vector<1x8x128xf32>,
    return
  }
  func.func @transform_0(%arg0: i32, %arg1: i32) -> (i32, i32, i32) {
    %c0_i32 = arith.constant 0 : i32
    %c0_i32_0 = arith.constant 0 : i32
    return %arg0, %c0_i32, %arg1 : i32, i32, i32
  }
  func.func @transform_1(%arg0: i32, %arg1: i32) -> (i32, i32) {
    %c0_i32 = arith.constant 0 : i32
    %c0_i32_0 = arith.constant 0 : i32
    %c0_i32_1 = arith.constant 0 : i32
    return %c0_i32, %c0_i32_0 : i32, i32
  }
  func.func @transform_2(%arg0: i32, %arg1: i32) -> (i32, i32) {
    %c0_i32 = arith.constant 0 : i32
    %c0_i32_0 = arith.constant 0 : i32
    %c0_i32_1 = arith.constant 0 : i32
    return %c0_i32, %c0_i32_0 : i32, i32
  }
  func.func @transform_3(%arg0: i32, %arg1: i32) -> (i32, i32, i32) {
    %c0_i32 = arith.constant 0 : i32
    %c0_i32_0 = arith.constant 0 : i32
    return %arg0, %c0_i32, %arg1 : i32, i32, i32
  }
}

</mosaic_0001>

<llo_original>
// kernel: tpu_custom_call.1
$region0: #{tpu_custom_call.1}
  #allocation0 [shape = 'u32[]', space=smem, size = 0x4, offset = 0x4, fixed_abs, tag = 'smem constant byte address 0x4 - core index']
  #allocation1 [shape = 'u32[72,128]{1,0:T(1,128)}', space=vmem, size = 0x9000, scoped, tag = 'internal scratch']
  %s0 = inlined_call_operand.vmem [shape: f32[2,4,256], index: 0, kind: input, shape index: {}]
  %s1 = inlined_call_operand.vmem [shape: f32[8,4], index: 1, kind: input, shape index: {}]
  %s2 = inlined_call_operand.vmem [shape: f32[8,1], index: 2, kind: input, shape index: {}]
  %s3 = inlined_call_operand.hbm [shape: f32[2,8,256], index: 3, kind: output, shape index: {}]
  %s4 = sld [smem:[#allocation0]]
  $region45: #{tpu_custom_call.1} parent=0
    _
  %s6 = ssub.s32 1, %s4
  %s7 = scalar_select 0, %s6, %s4
  $region1: #{tpu_custom_call.1} parent=0
    #allocation2 [shape = 'u8[8192]{0}', space=vmem, size = 0x2000, scoped, tag = 'output window, operand 0']
    #allocation3 [shape = 's32[2]{0}', space=sflag, size = 0x8, scoped, tag = 'scoped memory for tpu_custom_call.1']
    %8 = vsyncpa [#allocation3], 0
    %s9 = scalar_lea.sflag [#allocation3], 1
    %10 = vsyncpa %s9, 0
    loop: start=0, step=1, limit=6
    $region2: #{tpu_custom_call.1} parent=1 // loop_pre_header
      _
    $region3: #{tpu_custom_call.1} parent=1 // loop_header
      %s12 = sphi 0, %s16
      %p13 = scmp.ge.s32.totalorder %s12, 6
      %s19 = sphi 0, %s31
      %s20 = sphi 0, %s27
      %s21 = sphi 0, %s19
      %s22 = sphi 0, %s20
      %s23 = sphi 0, %s21
      %s24 = sphi 0, %s22
      %s36 = sphi 0, %s38
      %s39 = sphi 0, %s36
      %s40 = sphi 0, %s39
      %s56 = sphi 0, %s40
      %s60 = sphi 0, %s60
      %s62 = sphi 0, %s60
      %s63 = sphi 0, %s62
      %s77 = sphi 0, %s63
      %s81 = sphi 0, %s81
      %s83 = sphi 0, %s81
      %s84 = sphi 0, %s83
      %s98 = sphi 0, %s84
      %s106 = sphi 0, %s108
      %s109 = sphi 0, %s106
      %s110 = sphi 0, %s109
      %s126 = sphi 0, %s110
    $region4: #{tpu_custom_call.1} parent=1 // loop_header_branch
      %15 = sbr.rel (%p13) target = $region8
    $region5: #{tpu_custom_call.1} parent=1 // loop_body
      %s17 = ssub.s32 %s12, 1
      %s18 = ssub.s32 %s12, 2
      %s25 = sadd.s32 1, %s20
      %p26 = scmp.ge.s32.totalorder %s25, 2
      %s27 = scalar_select %p26, 0, %s25
      %s28 = sadd.s32 1, %s19
      %s29 = scalar_select %p26, %s28, %s19
      %p30 = scmp.ge.s32.totalorder %s29, 2
      %s31 = scalar_select %p30, 0, %s29
      %s32 = ssub.s32 %s19, %s31
      %s33 = ssub.s32 %s20, %s27
      %s34 = sor.u32 %s32, %s33
      %p35 = scmp.eq.s32.totalorder %s34, 0
      %s37 = sadd.s32 %s36, 1
      %s38 = scalar_select %p35, %s36, %s37
      %p41 = pneg %p35
      %p42 = scmp.eq.s32.totalorder %s12, 3
      %p43 = por %p41, %p42
      %p44 = scmp.ne.s32.totalorder %s36, %s39
      %p45 = scmp.eq.s32.totalorder %s12, 0
      %p46 = por %p44, %p45
      %p47 = scmp.ne.s32.totalorder %s36, %s39
      %p48 = scmp.eq.s32.totalorder %s17, 3
      %p49 = por %p47, %p48
      %p50 = scmp.ne.s32.totalorder %s39, %s40
      %p51 = scmp.eq.s32.totalorder %s17, 0
      %p52 = por %p50, %p51
      %p53 = scmp.ne.s32.totalorder %s39, %s40
      %p54 = scmp.eq.s32.totalorder %s18, 3
      %p55 = por %p53, %p54
      %p57 = scmp.ne.s32.totalorder %s40, %s56
      %p58 = scmp.eq.s32.totalorder %s18, 0
      %p59 = por %p57, %p58
      %s61 = sadd.s32 %s60, 1
      %p64 = scmp.eq.s32.totalorder %s12, 3
      %p65 = scmp.ne.s32.totalorder %s60, %s62
      %p66 = scmp.eq.s32.totalorder %s12, 0
      %p67 = por %p65, %p66
      %p68 = scmp.ne.s32.totalorder %s60, %s62
      %p69 = scmp.eq.s32.totalorder %s17, 3
      %p70 = por %p68, %p69
      %p71 = scmp.ne.s32.totalorder %s62, %s63
      %p72 = scmp.eq.s32.totalorder %s17, 0
      %p73 = por %p71, %p72
      %p74 = scmp.ne.s32.totalorder %s62, %s63
      %p75 = scmp.eq.s32.totalorder %s18, 3
      %p76 = por %p74, %p75
      %p78 = scmp.ne.s32.totalorder %s63, %s77
      %p79 = scmp.eq.s32.totalorder %s18, 0
      %p80 = por %p78, %p79
      %s82 = sadd.s32 %s81, 1
      %p85 = scmp.eq.s32.totalorder %s12, 3
      %p86 = scmp.ne.s32.totalorder %s81, %s83
      %p87 = scmp.eq.s32.totalorder %s12, 0
      %p88 = por %p86, %p87
      %p89 = scmp.ne.s32.totalorder %s81, %s83
      %p90 = scmp.eq.s32.totalorder %s17, 3
      %p91 = por %p89, %p90
      %p92 = scmp.ne.s32.totalorder %s83, %s84
      %p93 = scmp.eq.s32.totalorder %s17, 0
      %p94 = por %p92, %p93
      %p95 = scmp.ne.s32.totalorder %s83, %s84
      %p96 = scmp.eq.s32.totalorder %s18, 3
      %p97 = por %p95, %p96
      %p99 = scmp.ne.s32.totalorder %s84, %s98
      %p100 = scmp.eq.s32.totalorder %s18, 0
      %p101 = por %p99, %p100
      %s102 = ssub.s32 %s19, %s31
      %s103 = ssub.s32 %s20, %s27
      %s104 = sor.u32 %s102, %s103
      %p105 = scmp.eq.s32.totalorder %s104, 0
      %s107 = sadd.s32 %s106, 1
      %s108 = scalar_select %p105, %s106, %s107
      %p111 = pneg %p105
      %p112 = scmp.eq.s32.totalorder %s12, 3
      %p113 = por %p111, %p112
      %p114 = scmp.ne.s32.totalorder %s106, %s109
      %p115 = scmp.eq.s32.totalorder %s12, 0
      %p116 = por %p114, %p115
      %p117 = scmp.ne.s32.totalorder %s106, %s109
      %p118 = scmp.eq.s32.totalorder %s17, 3
      %p119 = por %p117, %p118
      %p120 = scmp.ne.s32.totalorder %s109, %s110
      %p121 = scmp.eq.s32.totalorder %s17, 0
      %p122 = por %p120, %p121
      %p123 = scmp.ne.s32.totalorder %s109, %s110
      %p124 = scmp.eq.s32.totalorder %s18, 3
      %p125 = por %p123, %p124
      %p127 = scmp.ne.s32.totalorder %s110, %s126
      %p128 = scmp.eq.s32.totalorder %s18, 0
      %p129 = por %p127, %p128
      %p130 = scmp.le.s32.totalorder 1, %s12
      %p131 = scmp.lt.s32.totalorder %s12, 5
      %p132 = pnand %p130, %p131
      %p133 = pneg %p132
      // Predicated region
      $region9: #{tpu_custom_call.1} parent=5 // pred_check
        _
      $region10: #{tpu_custom_call.1} parent=5 // pred_check_branch
        %135 = sbr.rel (%p132) target = $region12
      $region11: #{tpu_custom_call.1} parent=5 // pred_region
        %s136 = ssub.s32 %s12, 1
        // Predicated region
        $region13: #{tpu_custom_call.1} parent=11 // pred_check
          %p137 = pneg %p73
        $region14: #{tpu_custom_call.1} parent=11 // pred_check_branch
          %139 = sbr.rel (%p137) target = $region16
        $region15: #{tpu_custom_call.1} parent=11 // pred_region
          _
        $region16: #{tpu_custom_call.1} parent=11 // pred_fallthru
          _
        // Predicated region
        $region17: #{tpu_custom_call.1} parent=11 // pred_check
          %p140 = pneg %p94
        $region18: #{tpu_custom_call.1} parent=11 // pred_check_branch
          %142 = sbr.rel (%p140) target = $region20
        $region19: #{tpu_custom_call.1} parent=11 // pred_region
          _
        $region20: #{tpu_custom_call.1} parent=11 // pred_fallthru
          _
      $region12: #{tpu_custom_call.1} parent=5 // pred_fallthru
        _
      %p143 = scmp.lt.s32.totalorder %s12, 4
      // Predicated region
      $region21: #{tpu_custom_call.1} parent=5 // pred_check
        %p144 = pneg %p143
      $region22: #{tpu_custom_call.1} parent=5 // pred_check_branch
        %146 = sbr.rel (%p144) target = $region24
      $region23: #{tpu_custom_call.1} parent=5 // pred_region
        // Predicated region
        $region25: #{tpu_custom_call.1} parent=23 // pred_check
          %p147 = pneg %p46
        $region26: #{tpu_custom_call.1} parent=23 // pred_check_branch
          %149 = sbr.rel (%p147) target = $region28
        $region27: #{tpu_custom_call.1} parent=23 // pred_region
          %p150 = scmp.lt.s32.totalorder %s19, 1
          %s151 = scalar_select %p150, %s19, 1
          %p152 = scmp.lt.s32.totalorder %s20, 1
          %s153 = scalar_select %p152, %s20, 1
          %s154 = smul.addr %s151, 2
          %s155 = sadd.s32 %s153, %s154
          %s156 = smul.addr %s155, 4
          %s157 = scalar_lea.vmem %s0, %s156
        $region28: #{tpu_custom_call.1} parent=23 // pred_fallthru
          _
      $region24: #{tpu_custom_call.1} parent=5 // pred_fallthru
        _
      %p158 = scmp.le.s32.totalorder 1, %s12
      %p159 = scmp.lt.s32.totalorder %s12, 5
      %p160 = pnand %p158, %p159
      %p161 = pneg %p160
      // Predicated region
      $region29: #{tpu_custom_call.1} parent=5 // pred_check
        _
      $region30: #{tpu_custom_call.1} parent=5 // pred_check_branch
        %163 = sbr.rel (%p160) target = $region32
      $region31: #{tpu_custom_call.1} parent=5 // pred_region
        %s164 = ssub.s32 %s12, 1
        %p165 = scmp.lt.s32.totalorder %s21, 1
        %s166 = scalar_select %p165, %s21, 1
        %p167 = scmp.lt.s32.totalorder %s22, 1
        %s168 = scalar_select %p167, %s22, 1
        %s169 = smul.addr %s166, 2
        %s170 = sadd.s32 %s168, %s169
        %s171 = smul.addr %s170, 4
        %s172 = scalar_lea.vmem %s0, %s171
        %p173 = pneg %p52
        %p174 = pneg %p49
        %p175 = pneg %p73
        %p176 = pneg %p70
        %p177 = pneg %p94
        %p178 = pneg %p91
        %p179 = pneg %p122
        %p180 = pneg %p119
        %s181 = sand.u32 %s109, 1
        %s182 = scalar_lea.sflag [#allocation3], %s181
        %s183 = sand.u32 %s109, 1
        %s184 = smul.addr %s183, 8
        %s185 = scalar_lea.vmem [#allocation2], %s184
        %p186 = scmp.lt.s32.totalorder %s21, 1
        %s187 = scalar_select %p186, %s21, 1
        %p188 = scmp.lt.s32.totalorder %s22, 1
        %s189 = scalar_select %p188, %s22, 1
        %s190 = smul.addr %s187, 2
        %s191 = sadd.s32 %s189, %s190
        %s192 = smul.addr %s191, 4
        %s193 = scalar_lea.vmem %s0, %s192
        %v194 = vld [vmem:[%s193] sm:$0xf]
        %v195 = vld [vmem:[%s1] sm:$0xff]
        %v196 = vld [vmem:[%s2] sm:$0xff]
        %198 = vset.pattern.permute.xlu0 0
        %199 = vperm.xlu0 %198, %v196
        %v200 = vpop.permute.xlu0 %199
        %vm202 = vcmask 31744
        %v204 = vsel %vm202, %v195, 0
        %vm206 = vcmask 1043456
        %v208 = vsel %vm206, %v194, 0
        %210 = vmatpush.msra.mxu0 0.0
        %211 = vmatpush.msra.mxu0 0.0
        %212 = vmatpush.msra.mxu0 0.0
        %213 = vmatpush.msra.mxu0 0.0
        %214 = vmatpush.msra.mxu0 0.0
        %215 = vmatpush.msra.mxu0 0.0
        %216 = vmatpush.msra.mxu0 0.0
        %217 = vmatpush.msra.mxu0 0.0
        %218 = vmatpush.msra.mxu0 0.0
        %219 = vmatpush.msra.mxu0 0.0
        %220 = vmatpush.msra.mxu0 0.0
        %221 = vmatpush.msra.mxu0 0.0
        %222 = vmatpush.msra.mxu0 0.0
        %223 = vmatpush.msra.mxu0 0.0
        %224 = vmatpush.msra.mxu0 0.0
        %225 = vmatpush.msra.mxu0 %v208
        %226 = vmatmul.f32.gmra.mxu0 %v204
        %v227 = vpop.f32.mrf.mxu0
        %v228 = vadd.f32 %v200, %v227
        %229 = vdwg.mxu0
        %230 = vst [vmem:[%s185] sm:$0xff] %v228
        %s231 = sand.u32 %s109, 1
        %s232 = scalar_lea.sflag [#allocation3], %s231
        %s233 = sand.u32 %s109, 1
        %s234 = smul.addr %s233, 8
        %s235 = scalar_lea.vmem [#allocation2], %s234
        // Predicated region
        $region33: #{tpu_custom_call.1} parent=31 // pred_check
          %p236 = pneg %p119
        $region34: #{tpu_custom_call.1} parent=31 // pred_check_branch
          %238 = sbr.rel (%p236) target = $region36
        $region35: #{tpu_custom_call.1} parent=31 // pred_region
          %240 = vsyncadd %s232, 0
          %s241 = smul.addr %s21, 2
          %s242 = sadd.s32 %s22, %s241
          %s243 = smul.addr %s242, 8
          %s244 = scalar_lea.hbm %s3, %s243
          %s246 = sshll.u32 %s235, 4
          %s247 = int_to_ptr.vmem [resolvable:$true] %s246
          %s248 = sshll.u32 %s244, 4
          %s249 = int_to_ptr.hbm [resolvable:$true] %s248
          %251 = dma.vmem_to_hbm [thread:$0]  %s247, 128, %s249, %s232
        $region36: #{tpu_custom_call.1} parent=31 // pred_fallthru
          _
      $region32: #{tpu_custom_call.1} parent=5 // pred_fallthru
        _
      %p252 = scmp.le.s32.totalorder 2, %s12
      // Predicated region
      $region37: #{tpu_custom_call.1} parent=5 // pred_check
        %p253 = pneg %p252
      $region38: #{tpu_custom_call.1} parent=5 // pred_check_branch
        %255 = sbr.rel (%p253) target = $region40
      $region39: #{tpu_custom_call.1} parent=5 // pred_region
        %s256 = ssub.s32 %s12, 2
        // Predicated region
        $region41: #{tpu_custom_call.1} parent=39 // pred_check
          %p257 = pneg %p125
        $region42: #{tpu_custom_call.1} parent=39 // pred_check_branch
          %259 = sbr.rel (%p257) target = $region44
        $region43: #{tpu_custom_call.1} parent=39 // pred_region
          %s260 = sand.u32 %s110, 1
          %s261 = scalar_lea.sflag [#allocation3], %s260
          %s262 = sand.u32 %s110, 1
          %s263 = smul.addr %s262, 8
          %s264 = scalar_lea.vmem [#allocation2], %s263
          %266 = dma.done %s261, 128
        $region44: #{tpu_custom_call.1} parent=39 // pred_fallthru
          _
      $region40: #{tpu_custom_call.1} parent=5 // pred_fallthru
        _
    $region6: #{tpu_custom_call.1} parent=1 // loop_footer
      %s16 = sadd.s32 1, %s12
    $region7: #{tpu_custom_call.1} parent=1 // loop_footer_branch
      %11 = sbr.rel target = $region3
    $region8: #{tpu_custom_call.1} parent=1 // loop_exit
      _
    %267 = vsyncpa [#allocation3], 1
    %s268 = scalar_lea.sflag [#allocation3], 1
    %269 = vsyncpa %s268, 1

</llo_original>
